<compile_context>
chip_gen: v5e
topology: v5e:2x2
jax: 0.10.0
libtpu: 0.0.40
codegen_flags: <defaults>
</compile_context>

<pallas_src>
import jax
import jax.numpy as jnp
from jax import lax
from jax.experimental import pallas as pl
from jax.experimental.pallas import tpu as pltpu


def _round_up(x, m):
    return ((x + m - 1) // m) * m


def _make_neuralmf_kernel(n_dnn_layers, dmf_pad):
    """Kernel for a fixed number of dnn_network layers.

    Operand order (all feature-major: features on sublanes, batch on lanes):
      idx     (2, TILE_B) int32             [user ids ; item ids]
      tab_u   (dmf_pad + half_pad, Nu) bf16 fused [MF_user.T ; MLP_user.T]
      tab_i   (dmf_pad + half_pad, Ni) bf16 fused [MF_item.T ; MLP_item.T]
      w0, b0                                first dnn layer (columns re-ordered
                                            for the stacked gather output)
      (w, b) * (n_dnn_layers - 1)
      wlin, blin                            self.linear (padded to dmf_pad rows)
      w2mf, w2mlp                           linear2 weight split, each (dmf_pad, 1)
      b2      (1, 1)
      out     (1, TILE_B)
    """

    def kernel(*refs):
        idx_ref, tabu_ref, tabi_ref, w0_ref, b0_ref = refs[:5]
        pos = 5
        dnn_rest = []
        for _ in range(n_dnn_layers - 1):
            dnn_rest.append((refs[pos], refs[pos + 1]))
            pos += 2
        wlin_ref, blin_ref, w2mf_ref, w2mlp_ref, b2_ref = refs[pos:pos + 5]
        out_ref = refs[pos + 5]

        tile = out_ref.shape[1]                 # TILE_B (lane dim)

        ids = idx_ref[...]                      # (2, TILE_B) int32
        u_ids = ids[0:1, :]                     # (1, TILE_B)
        i_ids = ids[1:2, :]                     # (1, TILE_B)

        def one_hot(n, row_ids):
            # bf16 one-hot (values exactly 0/1): half the VMEM/vreg footprint
            # and vst traffic of f32, feeds the MXU's native bf16 path.
            iota = lax.broadcasted_iota(jnp.int32, (n, tile), 0)
            return (iota == row_ids).astype(jnp.float32).astype(jnp.bfloat16)

        # Built ONCE per id set; each is consumed by a single fused gather.
        oh_u = one_hot(tabu_ref.shape[1], u_ids)        # (Nu, T) bf16
        oh_i = one_hot(tabi_ref.shape[1], i_ids)        # (Ni, T) bf16

        # Fused gathers: column j of g_u == [mf_user[uid_j] ; mlp_user[uid_j]].
        g_u = jnp.dot(tabu_ref[...], oh_u, preferred_element_type=jnp.float32)
        g_i = jnp.dot(tabi_ref[...], oh_i, preferred_element_type=jnp.float32)

        # --- GMF branch (padded rows are zero in the tables -> zero products) -
        mf_vec = g_u[:dmf_pad, :] * g_i[:dmf_pad, :]    # (dmf_pad, T)

        # --- MLP branch ------------------------------------------------------
        # Single first-layer matmul over the stacked [mlp_u ; mlp_i] block.
        mlp_cat = jnp.concatenate([g_u[dmf_pad:, :], g_i[dmf_pad:, :]], axis=0)
        x = jnp.dot(w0_ref[...], mlp_cat, preferred_element_type=jnp.float32)
        x = jnp.maximum(x + b0_ref[...], 0.0)           # ReLU
        for w_ref, b_ref in dnn_rest:
            x = jnp.dot(w_ref[...], x, preferred_element_type=jnp.float32)
            x = jnp.maximum(x + b_ref[...], 0.0)

        # self.linear (no relu); padded to dmf_pad output rows (extra rows = 0)
        mlp_vec = jnp.dot(wlin_ref[...], x,
                          preferred_element_type=jnp.float32) + blin_ref[...]

        # --- Head: linear2 over concat([MF_vec, MLP_vec]) + sigmoid -----------
        # Fused: single cross-sublane (XLU) reduce; VPU add is free filler.
        logit = jnp.sum(mf_vec * w2mf_ref[...] + mlp_vec * w2mlp_ref[...],
                        axis=0, keepdims=True) + b2_ref[...]      # (1, T)
        # Stable sigmoid: clamp keeps exp finite; exp + approx reciprocal both
        # land on the EUP slot.
        z = jnp.exp(-jnp.maximum(logit, -30.0))
        out_ref[...] = pl.reciprocal(1.0 + z, approx=True)

    return kernel


def prepare_operands(params):
    """One-time host-side packing: fused/transposed/padded bf16 tables and
    torch-layout weights re-arranged for feature-major matmuls."""
    mf_user, mf_item = params['mf_user'], params['mf_item']
    mlp_user, mlp_item = params['mlp_user'], params['mlp_item']
    mf_dim = mf_user.shape[1]
    half = mlp_user.shape[1]
    dmf_pad = _round_up(mf_dim, 8)      # MLP rows start on a sublane boundary
    half_pad = _round_up(half, 8)

    def fuse(mf_tab, mlp_tab):
        n = mf_tab.shape[0]
        t = jnp.zeros((dmf_pad + half_pad, n), jnp.float32)
        t = t.at[:mf_dim, :].set(mf_tab.T)
        t = t.at[dmf_pad:dmf_pad + half, :].set(mlp_tab.T)
        return t.astype(jnp.bfloat16)   # gather operand only; halves VMEM

    tab_u = fuse(mf_user, mlp_user)
    tab_i = fuse(mf_item, mlp_item)

    dnn = params['dnn']
    w0, b0 = dnn[0]
    h1 = w0.shape[0]
    # Re-order / zero-pad w0 columns to match the stacked gather layout.
    w0p = jnp.zeros((h1, 2 * half_pad), jnp.float32)
    w0p = w0p.at[:, :half].set(w0[:, :half])
    w0p = w0p.at[:, half_pad:half_pad + half].set(w0[:, half:])

    ops = [tab_u, tab_i, w0p, b0.reshape(-1, 1)]
    for w, b in dnn[1:]:
        ops += [w, b.reshape(-1, 1)]

    wlin, blin = params['lin_w'], params['lin_b']
    wlin_p = jnp.zeros((dmf_pad, wlin.shape[1]), jnp.float32).at[:mf_dim].set(wlin)
    blin_p = jnp.zeros((dmf_pad, 1), jnp.float32).at[:mf_dim, 0].set(blin)

    w2 = params['lin2_w'][0]            # (2 * mf_dim,)
    w2mf = jnp.zeros((dmf_pad, 1), jnp.float32).at[:mf_dim, 0].set(w2[:mf_dim])
    w2mlp = jnp.zeros((dmf_pad, 1), jnp.float32).at[:mf_dim, 0].set(w2[mf_dim:])
    b2 = params['lin2_b'].reshape(1, 1).astype(jnp.float32)

    ops += [wlin_p, blin_p, w2mf, w2mlp, b2]
    ops = [jnp.asarray(o) for o in ops]
    return ops, len(dnn), dmf_pad


def _pick_tile(batch, max_tile):
    """Lane-tile size: multiple of 128, big enough to amortize per-step
    overhead, small enough that large batches get >= 2 parallel grid steps
    (both TensorCores on v7x)."""
    bp = _round_up(max(batch, 1), 128)
    if bp <= 128:
        return 128
    two_step = _round_up(pl.cdiv(bp, 2), 128)
    return max(128, min(max_tile, two_step))


def make_neural_mf(params, tile_b=1024):
    """Returns a jitted callable indices[B, 2] -> scores[B]."""
    ops, n_dnn, dmf_pad = prepare_operands(params)
    kernel = _make_neuralmf_kernel(n_dnn, dmf_pad)
    tile_b = max(128, _round_up(tile_b, 128))

    # Generation-aware VMEM budget (v5e/v6e: 128 MiB physical, v7x: 64 MiB).
    try:
        info = pltpu.get_tpu_info()
        vmem_cap = int(getattr(info, 'vmem_capacity_bytes', 128 * 2**20))
    except Exception:
        vmem_cap = 128 * 2**20
    vmem_limit = int(max(16 * 2**20, min(vmem_cap // 2, 64 * 2**20)))

    param_bytes = sum(int(o.size) * o.dtype.itemsize for o in ops)
    # MXU weight sizes for the cost estimate: w0p, dnn rest, wlin.
    mm_weights = ([ops[2]] + [ops[4 + 2 * k] for k in range(n_dnn - 1)]
                  + [ops[2 + 2 * n_dnn]])
    mm_cols = sum(int(w.shape[0]) * int(w.shape[1]) for w in mm_weights)
    gather_cols = (int(ops[0].shape[0]) * int(ops[0].shape[1])
                   + int(ops[1].shape[0]) * int(ops[1].shape[1]))

    @jax.jit
    def _forward(indices, *ops_):
        batch = indices.shape[0]
        tb = _pick_tile(batch, tile_b)
        grid = pl.cdiv(batch, tb)
        bp = grid * tb

        # Lane-dense index layout [2, B_pad]; padded rows reuse id 0 and are
        # discarded by the [:batch] slice below.
        idx = jnp.zeros((2, bp), jnp.int32).at[:, :batch].set(
            indices.astype(jnp.int32).T)

        cost = pl.CostEstimate(
            flops=int(2 * (gather_cols + mm_cols) * bp + 6 * dmf_pad * bp),
            transcendentals=int(bp),
            bytes_accessed=int(param_bytes + 2 * bp * 4 + bp * 4),
        )

        full_block = lambda t: (0, 0)   # parameters stay resident across tiles
        in_specs = [pl.BlockSpec((2, tb), lambda t: (0, t))]
        in_specs += [pl.BlockSpec(o.shape, full_block) for o in ops_]

        out = pl.pallas_call(
            kernel,
            out_shape=jax.ShapeDtypeStruct((1, bp), jnp.float32),
            grid=(grid,),
            in_specs=in_specs,
            out_specs=pl.BlockSpec((1, tb), lambda t: (0, t)),
            compiler_params=pltpu.CompilerParams(
                dimension_semantics=("parallel",),
                vmem_limit_bytes=vmem_limit),
            cost_estimate=cost,
        )(idx, *ops_)
        return out[0, :batch]

    return lambda indices: _forward(indices, *ops)


def init_params(key, num_users, num_items, mf_dim, layers):
    """torch-layout params: Embedding [N, D]; Linear weight [out, in], bias [out]."""
    assert len(layers) >= 2
    ks = list(jax.random.split(key, 2 * len(layers) + 6))
    it = iter(ks)

    def emb(n, d):
        return jax.random.normal(next(it), (n, d), jnp.float32)

    def linear(fan_in, fan_out):
        bound = 1.0 / (fan_in ** 0.5)
        w = jax.random.uniform(next(it), (fan_out, fan_in), jnp.float32, -bound, bound)
        b = jax.random.uniform(next(it), (fan_out,), jnp.float32, -bound, bound)
        return w, b

    p = {}
    p['mf_user'] = emb(num_users, mf_dim)
    p['mf_item'] = emb(num_items, mf_dim)
    p['mlp_user'] = emb(num_users, layers[0] // 2)
    p['mlp_item'] = emb(num_items, layers[0] // 2)
    p['dnn'] = [linear(fi, fo) for fi, fo in zip(layers[:-1], layers[1:])]
    p['lin_w'], p['lin_b'] = linear(layers[-1], mf_dim)
    p['lin2_w'], p['lin2_b'] = linear(2 * mf_dim, 1)
    return p


def neural_mf_reference(indices, p):
    """Pure-JAX mirror of the PyTorch forward (for correctness checking)."""
    u = indices[:, 0]
    i = indices[:, 1]
    mf_vec = p['mf_user'][u] * p['mf_item'][i]
    x = jnp.concatenate([p['mlp_user'][u], p['mlp_item'][i]], axis=-1)
    for w, b in p['dnn']:
        x = jax.nn.relu(x @ w.T + b)
    mlp_vec = x @ p['lin_w'].T + p['lin_b']
    vec = jnp.concatenate([mf_vec, mlp_vec], axis=-1)
    logit = vec @ p['lin2_w'].T + p['lin2_b']
    return jax.nn.sigmoid(logit)[:, 0]


if __name__ == "__main__":
    num_users, num_items, mf_embed_dim = 64, 96, 8
    layers = [32, 16, 8]          # MLP embeddings are layers[0]//2 = 16 each
    batch = 37

    key = jax.random.PRNGKey(0)
    kp, ku, ki = jax.random.split(key, 3)
    params = init_params(kp, num_users, num_items, mf_embed_dim, layers)

    u_idx = jax.random.randint(ku, (batch,), 0, num_users, jnp.int32)
    i_idx = jax.random.randint(ki, (batch,), 0, num_items, jnp.int32)
    indices = jnp.stack([u_idx, i_idx], axis=1)    # [B, 2]

    forward = make_neural_mf(params, tile_b=1024)  # params prepared once here
    out = jax.block_until_ready(forward(indices))
    ref = neural_mf_reference(indices, params)

    assert out.shape == (batch,), out.shape
    assert out.dtype == jnp.float32
    assert bool(jnp.all(jnp.isfinite(out)))
    # Tolerance accounts for the bf16 gather operands / bf16-pass MXU matmuls
    # (same rounding the previous default-precision version already incurred);
    # structural errors are >> 0.02.
    max_err = float(jnp.max(jnp.abs(out - ref)))
    assert jnp.allclose(out, ref, atol=2e-2, rtol=0.0), max_err
    print("KERNEL_OK")
</pallas_src>

<mosaic_0001>
module attributes {stable_mosaic.version = 11 : i64} {
  func.func @kernel(%arg0: i32, %arg1: memref<2x128xi32, #tpu.memory_space<vmem>>, %arg2: memref<24x64xbf16, #tpu.memory_space<vmem>>, %arg3: memref<24x96xbf16, #tpu.memory_space<vmem>>, %arg4: memref<16x32xf32, #tpu.memory_space<vmem>>, %arg5: memref<16x1xf32, #tpu.memory_space<vmem>>, %arg6: memref<8x16xf32, #tpu.memory_space<vmem>>, %arg7: memref<8x1xf32, #tpu.memory_space<vmem>>, %arg8: memref<8x8xf32, #tpu.memory_space<vmem>>, %arg9: memref<8x1xf32, #tpu.memory_space<vmem>>, %arg10: memref<8x1xf32, #tpu.memory_space<vmem>>, %arg11: memref<8x1xf32, #tpu.memory_space<vmem>>, %arg12: memref<1x1xf32, #tpu.memory_space<vmem>>, %arg13: memref<1x128xf32, #tpu.memory_space<vmem>>) attributes {dimension_semantics = [#tpu.dimension_semantics<parallel>], iteration_bounds = array<i64: 1>, scalar_prefetch = 0 : i64, scratch_operands = 0 : i64, tpu.core_type = #tpu.core_type<tc>, window_params = [{transform_indices = @transform_0, window_bounds = array<i64: 2, 128>}, {pipeline_mode = #tpu.pipeline_mode<synchronous>, transform_indices = @transform_1, window_bounds = array<i64: 24, 64>}, {pipeline_mode = #tpu.pipeline_mode<synchronous>, transform_indices = @transform_2, window_bounds = array<i64: 24, 96>}, {pipeline_mode = #tpu.pipeline_mode<synchronous>, transform_indices = @transform_3, window_bounds = array<i64: 16, 32>}, {pipeline_mode = #tpu.pipeline_mode<synchronous>, transform_indices = @transform_4, window_bounds = array<i64: 16, 1>}, {pipeline_mode = #tpu.pipeline_mode<synchronous>, transform_indices = @transform_5, window_bounds = array<i64: 8, 16>}, {pipeline_mode = #tpu.pipeline_mode<synchronous>, transform_indices = @transform_6, window_bounds = array<i64: 8, 1>}, {pipeline_mode = #tpu.pipeline_mode<synchronous>, transform_indices = @transform_7, window_bounds = array<i64: 8, 8>}, {pipeline_mode = #tpu.pipeline_mode<synchronous>, transform_indices = @transform_8, window_bounds = array<i64: 8, 1>}, {pipeline_mode = #tpu.pipeline_mode<synchronous>, transform_indices = @transform_9, window_bounds = array<i64: 8, 1>}, {pipeline_mode = #tpu.pipeline_mode<synchronous>, transform_indices = @transform_10, window_bounds = array<i64: 8, 1>}, {pipeline_mode = #tpu.pipeline_mode<synchronous>, transform_indices = @transform_11, window_bounds = array<i64: 1, 1>}, {transform_indices = @transform_12, window_bounds = array<i64: 1, 128>}]} {
    %c0 = arith.constant 0 : index
    %c0_0 = arith.constant 0 : index
    %0 = vector.load %arg1[%c0, %c0_0] : memref<2x128xi32, #tpu.memory_space<vmem>>, vector<2x128xi32>
    %1 = vector.extract_strided_slice %0 {offsets = [0, 0], sizes = [1, 128], strides = [1, 1]} : vector<2x128xi32> to vector<1x128xi32>
    %2 = vector.extract_strided_slice %0 {offsets = [1, 0], sizes = [1, 128], strides = [1, 1]} : vector<2x128xi32> to vector<1x128xi32>
    %3 = tpu.iota {dimensions = array<i32: 0>} : vector<64x128xi32>
    %4 = vector.broadcast %1 : vector<1x128xi32> to vector<64x128xi32>
    %5 = arith.cmpi eq, %3, %4 : vector<64x128xi32>
    %6 = arith.extui %5 : vector<64x128xi1> to vector<64x128xi32>
    %7 = arith.sitofp %6 : vector<64x128xi32> to vector<64x128xf32>
    %8 = arith.truncf %7 : vector<64x128xf32> to vector<64x128xbf16>
    %9 = tpu.iota {dimensions = array<i32: 0>} : vector<96x128xi32>
    %10 = vector.broadcast %2 : vector<1x128xi32> to vector<96x128xi32>
    %11 = arith.cmpi eq, %9, %10 : vector<96x128xi32>
    %12 = arith.extui %11 : vector<96x128xi1> to vector<96x128xi32>
    %13 = arith.sitofp %12 : vector<96x128xi32> to vector<96x128xf32>
    %14 = arith.truncf %13 : vector<96x128xf32> to vector<96x128xbf16>
    %c0_1 = arith.constant 0 : index
    %c0_2 = arith.constant 0 : index
    %15 = vector.load %arg2[%c0_1, %c0_2] : memref<24x64xbf16, #tpu.memory_space<vmem>>, vector<24x64xbf16>
    %cst = arith.constant dense<0.000000e+00> : vector<24x128xf32>
    %16 = tpu.matmul %15, %8, %cst {dimension_numbers = #tpu.dot_dimension_numbers<[1], [0], [0], [1], [0, 0, 1, 1], [], []>} : vector<24x64xbf16>, vector<64x128xbf16>, vector<24x128xf32> -> vector<24x128xf32>
    %c0_3 = arith.constant 0 : index
    %c0_4 = arith.constant 0 : index
    %17 = vector.load %arg3[%c0_3, %c0_4] : memref<24x96xbf16, #tpu.memory_space<vmem>>, vector<24x96xbf16>
    %cst_5 = arith.constant dense<0.000000e+00> : vector<24x128xf32>
    %18 = tpu.matmul %17, %14, %cst_5 {dimension_numbers = #tpu.dot_dimension_numbers<[1], [0], [0], [1], [0, 0, 1, 1], [], []>} : vector<24x96xbf16>, vector<96x128xbf16>, vector<24x128xf32> -> vector<24x128xf32>
    %19 = vector.extract_strided_slice %16 {offsets = [0, 0], sizes = [8, 128], strides = [1, 1]} : vector<24x128xf32> to vector<8x128xf32>
    %20 = vector.extract_strided_slice %18 {offsets = [0, 0], sizes = [8, 128], strides = [1, 1]} : vector<24x128xf32> to vector<8x128xf32>
    %21 = arith.mulf %19, %20 : vector<8x128xf32>
    %22 = vector.extract_strided_slice %16 {offsets = [8, 0], sizes = [16, 128], strides = [1, 1]} : vector<24x128xf32> to vector<16x128xf32>
    %23 = vector.extract_strided_slice %18 {offsets = [8, 0], sizes = [16, 128], strides = [1, 1]} : vector<24x128xf32> to vector<16x128xf32>
    %24 = tpu.concatenate %22, %23 in 0 : vector<16x128xf32>, vector<16x128xf32> -> vector<32x128xf32>
    %c0_6 = arith.constant 0 : index
    %c0_7 = arith.constant 0 : index
    %25 = vector.load %arg4[%c0_6, %c0_7] : memref<16x32xf32, #tpu.memory_space<vmem>>, vector<16x32xf32>
    %cst_8 = arith.constant dense<0.000000e+00> : vector<16x128xf32>
    %26 = tpu.matmul %25, %24, %cst_8 {dimension_numbers = #tpu.dot_dimension_numbers<[1], [0], [0], [1], [0, 0, 1, 1], [], []>} : vector<16x32xf32>, vector<32x128xf32>, vector<16x128xf32> -> vector<16x128xf32>
    %c0_9 = arith.constant 0 : index
    %c0_10 = arith.constant 0 : index
    %27 = vector.load %arg5[%c0_9, %c0_10] : memref<16x1xf32, #tpu.memory_space<vmem>>, vector<16x1xf32>
    %28 = vector.broadcast %27 : vector<16x1xf32> to vector<16x128xf32>
    %29 = arith.addf %26, %28 : vector<16x128xf32>
    %cst_11 = arith.constant 0.000000e+00 : f32
    %30 = vector.broadcast %cst_11 : f32 to vector<16x128xf32>
    %31 = arith.maximumf %29, %30 : vector<16x128xf32>
    %c0_12 = arith.constant 0 : index
    %c0_13 = arith.constant 0 : index
    %32 = vector.load %arg6[%c0_12, %c0_13] : memref<8x16xf32, #tpu.memory_space<vmem>>, vector<8x16xf32>
    %cst_14 = arith.constant dense<0.000000e+00> : vector<8x128xf32>
    %33 = tpu.matmul %32, %31, %cst_14 {dimension_numbers = #tpu.dot_dimension_numbers<[1], [0], [0], [1], [0, 0, 1, 1], [], []>} : vector<8x16xf32>, vector<16x128xf32>, vector<8x128xf32> -> vector<8x128xf32>
    %c0_15 = arith.constant 0 : index
    %c0_16 = arith.constant 0 : index
    %34 = vector.load %arg7[%c0_15, %c0_16] : memref<8x1xf32, #tpu.memory_space<vmem>>, vector<8x1xf32>
    %35 = vector.broadcast %34 : vector<8x1xf32> to vector<8x128xf32>
    %36 = arith.addf %33, %35 : vector<8x128xf32>
    %cst_17 = arith.constant 0.000000e+00 : f32
    %37 = vector.broadcast %cst_17 : f32 to vector<8x128xf32>
    %38 = arith.maximumf %36, %37 : vector<8x128xf32>
    %c0_18 = arith.constant 0 : index
    %c0_19 = arith.constant 0 : index
    %39 = vector.load %arg8[%c0_18, %c0_19] : memref<8x8xf32, #tpu.memory_space<vmem>>, vector<8x8xf32>
    %cst_20 = arith.constant dense<0.000000e+00> : vector<8x128xf32>
    %40 = tpu.matmul %39, %38, %cst_20 {dimension_numbers = #tpu.dot_dimension_numbers<[1], [0], [0], [1], [0, 0, 1, 1], [], []>} : vector<8x8xf32>, vector<8x128xf32>, vector<8x128xf32> -> vector<8x128xf32>
    %c0_21 = arith.constant 0 : index
    %c0_22 = arith.constant 0 : index
    %41 = vector.load %arg9[%c0_21, %c0_22] : memref<8x1xf32, #tpu.memory_space<vmem>>, vector<8x1xf32>
    %42 = vector.broadcast %41 : vector<8x1xf32> to vector<8x128xf32>
    %43 = arith.addf %40, %42 : vector<8x128xf32>
    %c0_23 = arith.constant 0 : index
    %c0_24 = arith.constant 0 : index
    %44 = vector.load %arg10[%c0_23, %c0_24] : memref<8x1xf32, #tpu.memory_space<vmem>>, vector<8x1xf32>
    %45 = vector.broadcast %44 : vector<8x1xf32> to vector<8x128xf32>
    %46 = arith.mulf %21, %45 : vector<8x128xf32>
    %c0_25 = arith.constant 0 : index
    %c0_26 = arith.constant 0 : index
    %47 = vector.load %arg11[%c0_25, %c0_26] : memref<8x1xf32, #tpu.memory_space<vmem>>, vector<8x1xf32>
    %48 = vector.broadcast %47 : vector<8x1xf32> to vector<8x128xf32>
    %49 = arith.mulf %43, %48 : vector<8x128xf32>
    %50 = arith.addf %46, %49 : vector<8x128xf32>
    %cst_27 = arith.constant dense<0.000000e+00> : vector<128xf32>
    %51 = vector.multi_reduction <add>, %50, %cst_27 [0] : vector<8x128xf32> to vector<128xf32>
    %52 = vector.shape_cast %51 : vector<128xf32> to vector<1x128xf32>
    %c0_28 = arith.constant 0 : index
    %c0_29 = arith.constant 0 : index
    %53 = vector.load %arg12[%c0_28, %c0_29] : memref<1x1xf32, #tpu.memory_space<vmem>>, vector<1x1xf32>
    %54 = vector.broadcast %53 : vector<1x1xf32> to vector<1x128xf32>
    %55 = arith.addf %52, %54 : vector<1x128xf32>
    %cst_30 = arith.constant -3.000000e+01 : f32
    %56 = vector.broadcast %cst_30 : f32 to vector<1x128xf32>
    %57 = arith.maximumf %55, %56 : vector<1x128xf32>
    %cst_31 = arith.constant 0.000000e+00 : f32
    %58 = vector.broadcast %cst_31 : f32 to vector<1x128xf32>
    %59 = arith.subf %58, %57 : vector<1x128xf32>
    %60 = math.exp %59 : vector<1x128xf32>
    %cst_32 = arith.constant 1.000000e+00 : f32
    %61 = vector.broadcast %cst_32 : f32 to vector<1x128xf32>
    %62 = arith.addf %61, %60 : vector<1x128xf32>
    %63 = tpu.reciprocal %62 {approx = true} : vector<1x128xf32> -> vector<1x128xf32>
    %c0_33 = arith.constant 0 : index
    %c0_34 = arith.constant 0 : index
    %64 = vector.load %arg13[%c0_33, %c0_34] : memref<1x128xf32, #tpu.memory_space<vmem>>, vector<1x128xf32>
    tpu.vector_store %arg13[%c0_33, %c0_34], %63 {strides = array<i32>} : memref<1x128xf32, #tpu.memory_space<vmem>>, vector<1x128xf32>,
    return
  }
  func.func @transform_0(%arg0: i32) -> (i32, i32) {
    %c0_i32 = arith.constant 0 : i32
    %c0_i32_0 = arith.constant 0 : i32
    return %c0_i32, %arg0 : i32, i32
  }
  func.func @transform_1(%arg0: i32) -> (i32, i32) {
    %c0_i32 = arith.constant 0 : i32
    %c0_i32_0 = arith.constant 0 : i32
    %c0_i32_1 = arith.constant 0 : i32
    return %c0_i32, %c0_i32_0 : i32, i32
  }
  func.func @transform_2(%arg0: i32) -> (i32, i32) {
    %c0_i32 = arith.constant 0 : i32
    %c0_i32_0 = arith.constant 0 : i32
    %c0_i32_1 = arith.constant 0 : i32
    return %c0_i32, %c0_i32_0 : i32, i32
  }
  func.func @transform_3(%arg0: i32) -> (i32, i32) {
    %c0_i32 = arith.constant 0 : i32
    %c0_i32_0 = arith.constant 0 : i32
    %c0_i32_1 = arith.constant 0 : i32
    return %c0_i32, %c0_i32_0 : i32, i32
  }
  func.func @transform_4(%arg0: i32) -> (i32, i32) {
    %c0_i32 = arith.constant 0 : i32
    %c0_i32_0 = arith.constant 0 : i32
    %c0_i32_1 = arith.constant 0 : i32
    return %c0_i32, %c0_i32_0 : i32, i32
  }
  func.func @transform_5(%arg0: i32) -> (i32, i32) {
    %c0_i32 = arith.constant 0 : i32
    %c0_i32_0 = arith.constant 0 : i32
    %c0_i32_1 = arith.constant 0 : i32
    return %c0_i32, %c0_i32_0 : i32, i32
  }
  func.func @transform_6(%arg0: i32) -> (i32, i32) {
    %c0_i32 = arith.constant 0 : i32
    %c0_i32_0 = arith.constant 0 : i32
    %c0_i32_1 = arith.constant 0 : i32
    return %c0_i32, %c0_i32_0 : i32, i32
  }
  func.func @transform_7(%arg0: i32) -> (i32, i32) {
    %c0_i32 = arith.constant 0 : i32
    %c0_i32_0 = arith.constant 0 : i32
    %c0_i32_1 = arith.constant 0 : i32
    return %c0_i32, %c0_i32_0 : i32, i32
  }
  func.func @transform_8(%arg0: i32) -> (i32, i32) {
    %c0_i32 = arith.constant 0 : i32
    %c0_i32_0 = arith.constant 0 : i32
    %c0_i32_1 = arith.constant 0 : i32
    return %c0_i32, %c0_i32_0 : i32, i32
  }
  func.func @transform_9(%arg0: i32) -> (i32, i32) {
    %c0_i32 = arith.constant 0 : i32
    %c0_i32_0 = arith.constant 0 : i32
    %c0_i32_1 = arith.constant 0 : i32
    return %c0_i32, %c0_i32_0 : i32, i32
  }
  func.func @transform_10(%arg0: i32) -> (i32, i32) {
    %c0_i32 = arith.constant 0 : i32
    %c0_i32_0 = arith.constant 0 : i32
    %c0_i32_1 = arith.constant 0 : i32
    return %c0_i32, %c0_i32_0 : i32, i32
  }
  func.func @transform_11(%arg0: i32) -> (i32, i32) {
    %c0_i32 = arith.constant 0 : i32
    %c0_i32_0 = arith.constant 0 : i32
    %c0_i32_1 = arith.constant 0 : i32
    return %c0_i32, %c0_i32_0 : i32, i32
  }
  func.func @transform_12(%arg0: i32) -> (i32, i32) {
    %c0_i32 = arith.constant 0 : i32
    %c0_i32_0 = arith.constant 0 : i32
    return %c0_i32, %arg0 : i32, i32
  }
}

</mosaic_0001>

<llo_original>
// kernel: _forward.1
$region0: #{_forward.1}
  #allocation0 [shape = 'u32[]', space=smem, size = 0x4, offset = 0x4, fixed_abs, tag = 'smem constant byte address 0x4 - core index']
  #allocation1 [shape = 'u32[72,128]{1,0:T(1,128)}', space=vmem, size = 0x9000, scoped, tag = 'internal scratch']
  #allocation2 [shape = 'f32[1,1]{1,0:T(1,128)S(1)}', space=vmem, size = 0x200, scoped, tag = 'scoped memory for _forward.1']
  %s0 = inlined_call_operand.vmem [shape: s32[2,128], index: 0, kind: input, shape index: {}]
  %s1 = inlined_call_operand.vmem [shape: bf16[24,64], index: 1, kind: input, shape index: {}]
  %s2 = inlined_call_operand.vmem [shape: bf16[24,96], index: 2, kind: input, shape index: {}]
  %s3 = inlined_call_operand.vmem [shape: f32[16,32], index: 3, kind: input, shape index: {}]
  %s4 = inlined_call_operand.vmem [shape: f32[16,1], index: 4, kind: input, shape index: {}]
  %s5 = inlined_call_operand.vmem [shape: f32[8,16], index: 5, kind: input, shape index: {}]
  %s6 = inlined_call_operand.vmem [shape: f32[8,1], index: 6, kind: input, shape index: {}]
  %s7 = inlined_call_operand.vmem [shape: f32[8,8], index: 7, kind: input, shape index: {}]
  %s8 = inlined_call_operand.vmem [shape: f32[8,1], index: 8, kind: input, shape index: {}]
  %s9 = inlined_call_operand.vmem [shape: f32[8,1], index: 9, kind: input, shape index: {}]
  %s10 = inlined_call_operand.vmem [shape: f32[8,1], index: 10, kind: input, shape index: {}]
  %s11 = inlined_call_operand.<no memory space> [shape: f32[1,1], index: 11, kind: input, shape index: {}]
  %s12 = inlined_call_operand.vmem [shape: f32[1,128], index: 12, kind: output, shape index: {}]
  %s13 = sld [smem:[#allocation0]]
  $region58: #{_forward.1} parent=0
    _
  %s15 = ssub.s32 1, %s13
  %s16 = scalar_select 0, %s15, %s13
  %v17 = vstv %s11
  %18 = vst [vmem:[#allocation2] sm:$0x1] %v17
  // Predicated region
  $region2: #{_forward.1} parent=0 // pred_check
    _
  $region3: #{_forward.1} parent=0 // pred_check_branch
    %20 = sbr.rel (0) target = $region5
  $region4: #{_forward.1} parent=0 // pred_region
    _
  $region5: #{_forward.1} parent=0 // pred_fallthru
    _
  // Predicated region
  $region6: #{_forward.1} parent=0 // pred_check
    _
  $region7: #{_forward.1} parent=0 // pred_check_branch
    %22 = sbr.rel (0) target = $region9
  $region8: #{_forward.1} parent=0 // pred_region
    _
  $region9: #{_forward.1} parent=0 // pred_fallthru
    _
  // Predicated region
  $region10: #{_forward.1} parent=0 // pred_check
    _
  $region11: #{_forward.1} parent=0 // pred_check_branch
    %24 = sbr.rel (0) target = $region13
  $region12: #{_forward.1} parent=0 // pred_region
    _
  $region13: #{_forward.1} parent=0 // pred_fallthru
    _
  // Predicated region
  $region14: #{_forward.1} parent=0 // pred_check
    _
  $region15: #{_forward.1} parent=0 // pred_check_branch
    %26 = sbr.rel (0) target = $region17
  $region16: #{_forward.1} parent=0 // pred_region
    _
  $region17: #{_forward.1} parent=0 // pred_fallthru
    _
  // Predicated region
  $region18: #{_forward.1} parent=0 // pred_check
    _
  $region19: #{_forward.1} parent=0 // pred_check_branch
    %28 = sbr.rel (0) target = $region21
  $region20: #{_forward.1} parent=0 // pred_region
    _
  $region21: #{_forward.1} parent=0 // pred_fallthru
    _
  // Predicated region
  $region22: #{_forward.1} parent=0 // pred_check
    _
  $region23: #{_forward.1} parent=0 // pred_check_branch
    %30 = sbr.rel (0) target = $region25
  $region24: #{_forward.1} parent=0 // pred_region
    _
  $region25: #{_forward.1} parent=0 // pred_fallthru
    _
  // Predicated region
  $region26: #{_forward.1} parent=0 // pred_check
    _
  $region27: #{_forward.1} parent=0 // pred_check_branch
    %32 = sbr.rel (0) target = $region29
  $region28: #{_forward.1} parent=0 // pred_region
    _
  $region29: #{_forward.1} parent=0 // pred_fallthru
    _
  // Predicated region
  $region30: #{_forward.1} parent=0 // pred_check
    _
  $region31: #{_forward.1} parent=0 // pred_check_branch
    %34 = sbr.rel (0) target = $region33
  $region32: #{_forward.1} parent=0 // pred_region
    _
  $region33: #{_forward.1} parent=0 // pred_fallthru
    _
  // Predicated region
  $region34: #{_forward.1} parent=0 // pred_check
    _
  $region35: #{_forward.1} parent=0 // pred_check_branch
    %36 = sbr.rel (0) target = $region37
  $region36: #{_forward.1} parent=0 // pred_region
    _
  $region37: #{_forward.1} parent=0 // pred_fallthru
    _
  // Predicated region
  $region38: #{_forward.1} parent=0 // pred_check
    _
  $region39: #{_forward.1} parent=0 // pred_check_branch
    %38 = sbr.rel (0) target = $region41
  $region40: #{_forward.1} parent=0 // pred_region
    _
  $region41: #{_forward.1} parent=0 // pred_fallthru
    _
  // Predicated region
  $region42: #{_forward.1} parent=0 // pred_check
    _
  $region43: #{_forward.1} parent=0 // pred_check_branch
    %40 = sbr.rel (0) target = $region45
  $region44: #{_forward.1} parent=0 // pred_region
    _
  $region45: #{_forward.1} parent=0 // pred_fallthru
    _
  // Predicated region
  $region46: #{_forward.1} parent=0 // pred_check
    _
  $region47: #{_forward.1} parent=0 // pred_check_branch
    %42 = sbr.rel (0) target = $region49
  $region48: #{_forward.1} parent=0 // pred_region
    _
  $region49: #{_forward.1} parent=0 // pred_fallthru
    _
  %v44 = vld [vmem:[%s0] sm:$0x3]
  %v45 = vlaneseq
  %v46 = vshrl.u32 %v45, 7
  %v47 = vadd.s32 %v46, 8
  %v48 = vadd.s32 %v46, 16
  %v49 = vadd.s32 %v46, 24
  %v50 = vadd.s32 %v46, 32
  %v51 = vadd.s32 %v46, 40
  %v52 = vadd.s32 %v46, 48
  %v53 = vadd.s32 %v46, 56
  %v54 = vperm.slane %v44, 0
  %vm55 = vcmp.eq.s32.totalorder %v46, %v54
  %vm56 = vcmp.eq.s32.totalorder %v47, %v54
  %vm57 = vcmp.eq.s32.totalorder %v48, %v54
  %vm58 = vcmp.eq.s32.totalorder %v49, %v54
  %vm59 = vcmp.eq.s32.totalorder %v50, %v54
  %vm60 = vcmp.eq.s32.totalorder %v51, %v54
  %vm61 = vcmp.eq.s32.totalorder %v52, %v54
  %vm62 = vcmp.eq.s32.totalorder %v53, %v54
  %v63 = vsel %vm55, 1, 0
  %v64 = vsel %vm56, 1, 0
  %v65 = vsel %vm57, 1, 0
  %v66 = vsel %vm58, 1, 0
  %v67 = vsel %vm59, 1, 0
  %v68 = vsel %vm60, 1, 0
  %v69 = vsel %vm61, 1, 0
  %v70 = vsel %vm62, 1, 0
  %v71 = vcvt.s32.f32 %v63
  %v72 = vcvt.s32.f32 %v64
  %v73 = vcvt.s32.f32 %v65
  %v74 = vcvt.s32.f32 %v66
  %v75 = vcvt.s32.f32 %v67
  %v76 = vcvt.s32.f32 %v68
  %v77 = vcvt.s32.f32 %v69
  %v78 = vcvt.s32.f32 %v70
  %v79 = vpack.c.bf16 %v72, %v71
  %v80 = vpack.c.bf16 %v74, %v73
  %v81 = vpack.c.bf16 %v76, %v75
  %v82 = vpack.c.bf16 %v78, %v77
  %v83 = vadd.s32 %v46, 64
  %v84 = vadd.s32 %v46, 72
  %v85 = vadd.s32 %v46, 80
  %v86 = vadd.s32 %v46, 88
  %v87 = vperm.slane %v44, 1
  %vm88 = vcmp.eq.s32.totalorder %v46, %v87
  %vm89 = vcmp.eq.s32.totalorder %v47, %v87
  %vm90 = vcmp.eq.s32.totalorder %v48, %v87
  %vm91 = vcmp.eq.s32.totalorder %v49, %v87
  %vm92 = vcmp.eq.s32.totalorder %v50, %v87
  %vm93 = vcmp.eq.s32.totalorder %v51, %v87
  %vm94 = vcmp.eq.s32.totalorder %v52, %v87
  %vm95 = vcmp.eq.s32.totalorder %v53, %v87
  %vm96 = vcmp.eq.s32.totalorder %v83, %v87
  %vm97 = vcmp.eq.s32.totalorder %v84, %v87
  %vm98 = vcmp.eq.s32.totalorder %v85, %v87
  %vm99 = vcmp.eq.s32.totalorder %v86, %v87
  %v100 = vsel %vm88, 1, 0
  %v101 = vsel %vm89, 1, 0
  %v102 = vsel %vm90, 1, 0
  %v103 = vsel %vm91, 1, 0
  %v104 = vsel %vm92, 1, 0
  %v105 = vsel %vm93, 1, 0
  %v106 = vsel %vm94, 1, 0
  %v107 = vsel %vm95, 1, 0
  %v108 = vsel %vm96, 1, 0
  %v109 = vsel %vm97, 1, 0
  %v110 = vsel %vm98, 1, 0
  %v111 = vsel %vm99, 1, 0
  %v112 = vcvt.s32.f32 %v100
  %v113 = vcvt.s32.f32 %v101
  %v114 = vcvt.s32.f32 %v102
  %v115 = vcvt.s32.f32 %v103
  %v116 = vcvt.s32.f32 %v104
  %v117 = vcvt.s32.f32 %v105
  %v118 = vcvt.s32.f32 %v106
  %v119 = vcvt.s32.f32 %v107
  %v120 = vcvt.s32.f32 %v108
  %v121 = vcvt.s32.f32 %v109
  %v122 = vcvt.s32.f32 %v110
  %v123 = vcvt.s32.f32 %v111
  %v124 = vpack.c.bf16 %v113, %v112
  %v125 = vpack.c.bf16 %v115, %v114
  %v126 = vpack.c.bf16 %v117, %v116
  %v127 = vpack.c.bf16 %v119, %v118
  %v128 = vpack.c.bf16 %v121, %v120
  %v129 = vpack.c.bf16 %v123, %v122
  %v130 = vld [vmem:[%s1] sm:$0xf]
  %v131 = vld [vmem:[%s1 + $0x4] sm:$0xf]
  %v132 = vld [vmem:[%s1 + $0x8] sm:$0xf]
  %v136 = vunpack.c.l.b16 %v130
  %v137 = vunpack.c.l.b16 %v131
  %v138 = vunpack.c.l.b16 %v132
  %v139 = vpack.c.b16 %v137, %v136
  %v140 = vpack.c.b16 %v138, %v138
  %vm141 = vcmask 523264
  %v143 = vsel %vm141, %v139, 0
  %v146 = vsel %vm141, %v140, 0
  %148 = vmatpush.bf16.msra.mxu0 0
  %149 = vmatpush.bf16.msra.mxu0 0
  %150 = vmatpush.bf16.msra.mxu0 0
  %151 = vmatpush.bf16.msra.mxu0 0
  %152 = vmatpush.bf16.msra.mxu0 %v82
  %153 = vmatpush.bf16.msra.mxu0 %v81
  %154 = vmatpush.bf16.msra.mxu0 %v80
  %155 = vmatpush.bf16.msra.mxu0 %v79
  %156 = vmatmul.bf16.gmra.mxu0 %v143
  %v157 = vpop.f32.mrf.mxu0
  %v158 = vadd.f32 0.0, %v157
  %v159 = vpop.f32.mrf.mxu0
  %v160 = vadd.f32 0.0, %v159
  %161 = vmatmul.bf16.gmra.mxu0 %v146
  %v162 = vpop.f32.mrf.mxu0
  %v163 = vadd.f32 0.0, %v162
  %v164 = vpop.f32.mrf.mxu0
  %165 = vdwg.mxu0
  %v166 = vld [vmem:[%s2] sm:$0xf]
  %v167 = vld [vmem:[%s2 + $0x4] sm:$0xf]
  %v168 = vld [vmem:[%s2 + $0x8] sm:$0xf]
  %v172 = vunpack.c.l.b16 %v166
  %v173 = vunpack.c.l.b16 %v167
  %v174 = vunpack.c.l.b16 %v168
  %v175 = vpack.c.b16 %v173, %v172
  %v176 = vpack.c.b16 %v174, %v174
  %vm177 = vcmask 785408
  %v179 = vsel %vm177, %v175, 0
  %v182 = vsel %vm177, %v176, 0
  %184 = vmatpush.bf16.msra.mxu0 0
  %185 = vmatpush.bf16.msra.mxu0 0
  %186 = vmatpush.bf16.msra.mxu0 %v129
  %187 = vmatpush.bf16.msra.mxu0 %v128
  %188 = vmatpush.bf16.msra.mxu0 %v127
  %189 = vmatpush.bf16.msra.mxu0 %v126
  %190 = vmatpush.bf16.msra.mxu0 %v125
  %191 = vmatpush.bf16.msra.mxu0 %v124
  %192 = vmatmul.bf16.gmra.mxu0 %v179
  %v193 = vpop.f32.mrf.mxu0
  %v194 = vadd.f32 0.0, %v193
  %v195 = vpop.f32.mrf.mxu0
  %v196 = vadd.f32 0.0, %v195
  %197 = vmatmul.bf16.gmra.mxu0 %v182
  %v198 = vpop.f32.mrf.mxu0
  %v199 = vadd.f32 0.0, %v198
  %v200 = vpop.f32.mrf.mxu0
  %201 = vdwg.mxu0
  %v202 = vmul.f32 %v158, %v194
  %v203 = vld [vmem:[%s3] sm:$0xff]
  %v204 = vld [vmem:[%s3 + $0x8] sm:$0xff]
  %v205 = vld [vmem:[%s4] sm:$0xff]
  %v206 = vld [vmem:[%s4 + $0x8] sm:$0xff]
  %208 = vset.pattern.permute.xlu0 0
  %209 = vperm.xlu0 %208, %v205
  %v210 = vpop.permute.xlu0 %209
  %213 = vset.pattern.permute.xlu0 0
  %214 = vperm.xlu0 %213, %v206
  %v215 = vpop.permute.xlu0 %214
  %vm217 = vcmask 261120
  %v219 = vsel %vm217, %v203, 0
  %v222 = vsel %vm217, %v204, 0
  %224 = vmatpush.msra.mxu0 0.0
  %225 = vmatpush.msra.mxu0 0.0
  %226 = vmatpush.msra.mxu0 0.0
  %227 = vmatpush.msra.mxu0 0.0
  %228 = vmatpush.msra.mxu0 0.0
  %229 = vmatpush.msra.mxu0 0.0
  %230 = vmatpush.msra.mxu0 0.0
  %231 = vmatpush.msra.mxu0 0.0
  %232 = vmatpush.msra.mxu0 0.0
  %233 = vmatpush.msra.mxu0 0.0
  %234 = vmatpush.msra.mxu0 0.0
  %235 = vmatpush.msra.mxu0 0.0
  %236 = vmatpush.msra.mxu0 %v199
  %237 = vmatpush.msra.mxu0 %v196
  %238 = vmatpush.msra.mxu0 %v163
  %239 = vmatpush.msra.mxu0 %v160
  %240 = vmatmul.f32.gmra.mxu0 %v219
  %v241 = vpop.f32.mrf.mxu0
  %v242 = vadd.f32 %v210, %v241
  %243 = vmatmul.f32.gmra.mxu0 %v222
  %v244 = vpop.f32.mrf.mxu0
  %v245 = vadd.f32 %v215, %v244
  %246 = vdwg.mxu0
  %v247 = vmax.f32 %v242, 0.0
  %v248 = vmax.f32 %v245, 0.0
  %v249 = vld [vmem:[%s5] sm:$0xff]
  %v250 = vld [vmem:[%s6] sm:$0xff]
  %252 = vset.pattern.permute.xlu0 0
  %253 = vperm.xlu0 %252, %v250
  %v254 = vpop.permute.xlu0 %253
  %vm256 = vcmask 130048
  %v258 = vsel %vm256, %v249, 0
  %260 = vmatpush.msra.mxu0 0.0
  %261 = vmatpush.msra.mxu0 0.0
  %262 = vmatpush.msra.mxu0 0.0
  %263 = vmatpush.msra.mxu0 0.0
  %264 = vmatpush.msra.mxu0 0.0
  %265 = vmatpush.msra.mxu0 0.0
  %266 = vmatpush.msra.mxu0 0.0
  %267 = vmatpush.msra.mxu0 0.0
  %268 = vmatpush.msra.mxu0 0.0
  %269 = vmatpush.msra.mxu0 0.0
  %270 = vmatpush.msra.mxu0 0.0
  %271 = vmatpush.msra.mxu0 0.0
  %272 = vmatpush.msra.mxu0 0.0
  %273 = vmatpush.msra.mxu0 0.0
  %274 = vmatpush.msra.mxu0 %v248
  %275 = vmatpush.msra.mxu0 %v247
  %276 = vmatmul.f32.gmra.mxu0 %v258
  %v277 = vpop.f32.mrf.mxu0
  %v278 = vadd.f32 %v254, %v277
  %279 = vdwg.mxu0
  %v280 = vmax.f32 %v278, 0.0
  %v281 = vld [vmem:[%s7] sm:$0xff]
  %v282 = vld [vmem:[%s8] sm:$0xff]
  %284 = vset.pattern.permute.xlu0 0
  %285 = vperm.xlu0 %284, %v282
  %v286 = vpop.permute.xlu0 %285
  %vm288 = vcmask 64512
  %v290 = vsel %vm288, %v281, 0
  %292 = vmatpush.msra.mxu0 0.0
  %293 = vmatpush.msra.mxu0 0.0
  %294 = vmatpush.msra.mxu0 0.0
  %295 = vmatpush.msra.mxu0 0.0
  %296 = vmatpush.msra.mxu0 0.0
  %297 = vmatpush.msra.mxu0 0.0
  %298 = vmatpush.msra.mxu0 0.0
  %299 = vmatpush.msra.mxu0 0.0
  %300 = vmatpush.msra.mxu0 0.0
  %301 = vmatpush.msra.mxu0 0.0
  %302 = vmatpush.msra.mxu0 0.0
  %303 = vmatpush.msra.mxu0 0.0
  %304 = vmatpush.msra.mxu0 0.0
  %305 = vmatpush.msra.mxu0 0.0
  %306 = vmatpush.msra.mxu0 0.0
  %307 = vmatpush.msra.mxu0 %v280
  %308 = vmatmul.f32.gmra.mxu0 %v290
  %v309 = vpop.f32.mrf.mxu0
  %v310 = vadd.f32 %v286, %v309
  %311 = vdwg.mxu0
  %v312 = vld [vmem:[%s9] sm:$0xff]
  %314 = vset.pattern.permute.xlu0 0
  %315 = vperm.xlu0 %314, %v312
  %v316 = vpop.permute.xlu0 %315
  %v318 = vmul.f32 %v202, %v316
  %v319 = vld [vmem:[%s10] sm:$0xff]
  %321 = vset.pattern.permute.xlu0 0
  %322 = vperm.xlu0 %321, %v319
  %v323 = vpop.permute.xlu0 %322
  %v325 = vmul.f32 %v310, %v323
  %v326 = vadd.f32 %v318, %v325
  %v327 = vrot.slane %v326, 4
  %v328 = vadd.f32 %v326, %v327
  %v329 = vrot.slane %v328, 2
  %v330 = vadd.f32 %v328, %v329
  %v331 = vrot.slane %v330, 1
  %v332 = vadd.f32 %v330, %v331
  %v333 = vld [vmem:[#allocation2] sm:$0x1]
  %335 = vset.pattern.permute.xlu0 0
  %336 = vperm.xlu0 %335, %v333
  %v337 = vpop.permute.xlu0 %336
  %v339 = vperm.slane %v337, 0
  %v340 = vadd.f32 %v332, %v339
  %v341 = vmax.f32 %v340, -30.0
  %v342 = vsub.f32 0.0, %v341
  %v343 = vmul.f32 %v342, 1.442695
  %v344 = vpow.pop %v343
  %v345 = vadd.f32 %v344, 1.0
  %v346 = vrcp.pop %v345
  %347 = vst [vmem:[%s12] sm:$0x1] %v346
  // Predicated region
  $region50: #{_forward.1} parent=0 // pred_check
    _
  $region51: #{_forward.1} parent=0 // pred_check_branch
    %349 = sbr.rel (0) target = $region53
  $region52: #{_forward.1} parent=0 // pred_region
    _
  $region53: #{_forward.1} parent=0 // pred_fallthru
    _
  // Predicated region
  $region54: #{_forward.1} parent=0 // pred_check
    _
  $region55: #{_forward.1} parent=0 // pred_check_branch
    %351 = sbr.rel (0) target = $region57
  $region56: #{_forward.1} parent=0 // pred_region
    _
  $region57: #{_forward.1} parent=0 // pred_fallthru
    _

</llo_original>
